<compile_context>
chip_gen: v5e
topology: v5e:2x2
jax: 0.10.0
libtpu: 0.0.40
codegen_flags: <defaults>
</compile_context>

<pallas_src>
import jax
import jax.numpy as jnp
from jax import lax
from jax.experimental import pallas as pl
from jax.experimental.pallas import tpu as pltpu

_LANE = 128
_SLAB_VMEM_BUDGET = 8 * 1024 * 1024  # bytes for the in+out slabs, double-buffered


def _wavelet_ffn_kernel(x_ref, w1_ref, b1_ref, w2_ref, b2_ref, o_ref):
    """o = W2' @ relu(W1' @ x + b1) + b2' on a lane-dense (4C, Pt) slab.

    DWT / gate / IDWT are folded into W1', W2', b2' in the wrapper, so this is
    a pure 2-matmul + ReLU pass: purely HBM-bandwidth bound at C4 = 16.
    """
    x = x_ref[...]
    h = jnp.dot(w1_ref[...], x,
                preferred_element_type=jnp.float32,
                precision=lax.Precision.HIGHEST) + b1_ref[...]
    h = jnp.maximum(h, 0.0)
    y = jnp.dot(w2_ref[...], h,
                preferred_element_type=jnp.float32,
                precision=lax.Precision.HIGHEST) + b2_ref[...]
    o_ref[...] = y.astype(o_ref.dtype)


def _pick_pixel_tile(ptot, c4):
    """Lane-tile size: big (VMEM-budgeted), 128-aligned, grid >= 2 when possible."""
    if ptot <= _LANE:
        return ptot  # tiny problem: one full block
    # 4 slab buffers live at once (input + output, each double-buffered), f32.
    cap = max(_LANE, (_SLAB_VMEM_BUDGET // (4 * c4 * 4)) // _LANE * _LANE)
    # Aim for at least 2 grid steps so a "parallel" grid can feed both v7x cores.
    half = ((ptot + 1) // 2 + _LANE - 1) // _LANE * _LANE
    return min(cap, half)


def wavelet_block(x, params):
    """x: (N, C, H, W) f32; params = (w1, b1, w2, b2, threshold)."""
    w1, b1, w2, b2, thr = params
    N, C, H, W = x.shape
    assert H % 2 == 0 and W % 2 == 0, "Haar J=1 kernel assumes even H, W"
    Hh, Wh = H // 2, W // 2
    C4 = 4 * C
    Ptot = N * Hh * Wh
    f32 = jnp.float32
    hi = lax.Precision.HIGHEST

    w1 = w1.reshape(C4, C4).astype(f32)
    w2 = w2.reshape(C4, C4).astype(f32)
    b1 = b1.reshape(C4).astype(f32)
    b2 = b2.reshape(C4).astype(f32)

    # ---- Fold DWT butterfly / detail gate / IDWT butterfly into the weights ----
    # Haar J=1 (orthonormal) on the polyphase components [a;b;c;d] is
    # B = 0.5 * kron(H4, I_C), and B @ B = I, so the same matrix is the inverse.
    h4 = jnp.array([[1., 1., 1., 1.],
                    [1., 1., -1., -1.],
                    [1., -1., 1., -1.],
                    [1., -1., -1., 1.]], f32)
    bfly = 0.5 * jnp.kron(h4, jnp.eye(C, dtype=f32))                   # (4C, 4C)
    gate = jnp.concatenate([jnp.ones((C,), f32),
                            jax.nn.sigmoid(thr.astype(f32)).reshape(3 * C)])
    w1p = jnp.dot(w1, bfly, precision=hi)                              # W1 @ B_dwt
    w2p = jnp.dot(bfly, gate[:, None] * w2, precision=hi)              # B_idwt @ G @ W2
    b2p = jnp.dot(bfly, gate * b2, precision=hi)                       # B_idwt @ G @ b2

    # ---- Polyphase split -> lane-dense (4C, N*Hh*Wh) slab ----
    # Rows: [a; b; c; d] blocks of C channels (a = x[...,0::2,0::2], etc.);
    # lanes: (N, Hh, Wh) pixels.  XLA may fuse this transpose into the kernel's
    # input DMA (allow_input_fusion below).
    xp = x.astype(f32).reshape(N, C, Hh, 2, Wh, 2)
    xp = jnp.transpose(xp, (3, 5, 1, 0, 2, 4)).reshape(C4, Ptot)

    Pt = _pick_pixel_tile(Ptot, C4)
    grid = (pl.cdiv(Ptot, Pt),)

    op = pl.pallas_call(
        _wavelet_ffn_kernel,
        out_shape=jax.ShapeDtypeStruct((C4, Ptot), f32),
        grid=grid,
        in_specs=[
            pl.BlockSpec((C4, Pt), lambda i: (0, i)),    # polyphase slab
            pl.BlockSpec((C4, C4), lambda i: (0, 0)),    # folded conv1 weight
            pl.BlockSpec((C4, 1), lambda i: (0, 0)),     # conv1 bias
            pl.BlockSpec((C4, C4), lambda i: (0, 0)),    # folded conv2 weight
            pl.BlockSpec((C4, 1), lambda i: (0, 0)),     # folded conv2 bias
        ],
        out_specs=pl.BlockSpec((C4, Pt), lambda i: (0, i)),
        compiler_params=pltpu.CompilerParams(
            dimension_semantics=("parallel",),
            vmem_limit_bytes=32 * 1024 * 1024,
            allow_input_fusion=[True, False, False, False, False],
        ),
    )(xp, w1p, b1.reshape(C4, 1), w2p, b2p.reshape(C4, 1))

    # Re-interleave polyphase components back to NCHW.
    out = op.reshape(2, 2, C, N, Hh, Wh)
    out = jnp.transpose(out, (3, 2, 4, 0, 5, 1)).reshape(N, C, H, W)
    return out.astype(x.dtype)


def wavelet_ref(x, params):
    """Pure-JAX reference mirroring the PyTorch WaveletBlock forward (unfolded)."""
    w1, b1, w2, b2, thr = params
    N, C, H, W = x.shape
    a = x[:, :, 0::2, 0::2]
    b = x[:, :, 0::2, 1::2]
    c = x[:, :, 1::2, 0::2]
    d = x[:, :, 1::2, 1::2]
    ll = 0.5 * (a + b + c + d)
    lh = 0.5 * (a + b - c - d)
    hl = 0.5 * (a - b + c - d)
    hh = 0.5 * (a - b - c + d)
    stacked = jnp.concatenate([ll, lh, hl, hh], axis=1)
    hi = lax.Precision.HIGHEST
    hmid = jnp.einsum('oi,nihw->nohw', w1, stacked,
                      precision=hi) + b1[None, :, None, None]
    hmid = jnp.maximum(hmid, 0.0)
    y = jnp.einsum('oi,nihw->nohw', w2, hmid,
                   precision=hi) + b2[None, :, None, None]
    t = jax.nn.sigmoid(thr)                           # (3, C, 1, 1)
    ll2, lh2, hl2, hh2 = jnp.split(y, 4, axis=1)
    lh2 = lh2 * t[0][None]
    hl2 = hl2 * t[1][None]
    hh2 = hh2 * t[2][None]
    oa = 0.5 * (ll2 + lh2 + hl2 + hh2)
    ob = 0.5 * (ll2 + lh2 - hl2 - hh2)
    oc = 0.5 * (ll2 - lh2 + hl2 - hh2)
    od = 0.5 * (ll2 - lh2 - hl2 + hh2)
    out = jnp.zeros((N, C, H, W), x.dtype)
    out = out.at[:, :, 0::2, 0::2].set(oa)
    out = out.at[:, :, 0::2, 1::2].set(ob)
    out = out.at[:, :, 1::2, 0::2].set(oc)
    out = out.at[:, :, 1::2, 1::2].set(od)
    return out


if __name__ == "__main__":
    N, C, H, W = 2, 4, 16, 16
    C4 = 4 * C

    key = jax.random.PRNGKey(0)
    kx, k1, k2, k3, k4, k5 = jax.random.split(key, 6)

    x = jax.random.normal(kx, (N, C, H, W), dtype=jnp.float32)

    # Synthetic parameters matching the nn.Module shapes:
    #   Conv2d(4C, 4C, 1): weight (4C, 4C, 1, 1) stored as (4C, 4C); bias (4C,)
    #   threshold: (3, C, 1, 1)  (module inits to zeros; random here exercises the gate)
    w1 = 0.1 * jax.random.normal(k1, (C4, C4), dtype=jnp.float32)
    b1 = 0.1 * jax.random.normal(k2, (C4,), dtype=jnp.float32)
    w2 = 0.1 * jax.random.normal(k3, (C4, C4), dtype=jnp.float32)
    b2 = 0.1 * jax.random.normal(k4, (C4,), dtype=jnp.float32)
    thr = 0.5 * jax.random.normal(k5, (3, C, 1, 1), dtype=jnp.float32)
    params = (w1, b1, w2, b2, thr)

    out = jax.block_until_ready(wavelet_block(x, params))
    ref = wavelet_ref(x, params)

    assert out.shape == (N, C, H, W)
    max_err = float(jnp.max(jnp.abs(out - ref)))
    assert jnp.allclose(out, ref, atol=2e-2, rtol=2e-2), max_err

    print("KERNEL_OK")
</pallas_src>

<mosaic_0001>
module attributes {stable_mosaic.version = 11 : i64} {
  func.func @_wavelet_ffn_kernel(%arg0: i32, %arg1: memref<16x128xf32, #tpu.memory_space<vmem>>, %arg2: memref<16x16xf32, #tpu.memory_space<vmem>>, %arg3: memref<16x1xf32, #tpu.memory_space<vmem>>, %arg4: memref<16x16xf32, #tpu.memory_space<vmem>>, %arg5: memref<16x1xf32, #tpu.memory_space<vmem>>, %arg6: memref<16x128xf32, #tpu.memory_space<vmem>>) attributes {dimension_semantics = [#tpu.dimension_semantics<parallel>], iteration_bounds = array<i64: 1>, scalar_prefetch = 0 : i64, scratch_operands = 0 : i64, tpu.core_type = #tpu.core_type<tc>, window_params = [{transform_indices = @transform_0, window_bounds = array<i64: 16, 128>}, {pipeline_mode = #tpu.pipeline_mode<synchronous>, transform_indices = @transform_1, window_bounds = array<i64: 16, 16>}, {pipeline_mode = #tpu.pipeline_mode<synchronous>, transform_indices = @transform_2, window_bounds = array<i64: 16, 1>}, {pipeline_mode = #tpu.pipeline_mode<synchronous>, transform_indices = @transform_3, window_bounds = array<i64: 16, 16>}, {pipeline_mode = #tpu.pipeline_mode<synchronous>, transform_indices = @transform_4, window_bounds = array<i64: 16, 1>}, {transform_indices = @transform_5, window_bounds = array<i64: 16, 128>}]} {
    %c0 = arith.constant 0 : index
    %c0_0 = arith.constant 0 : index
    %0 = vector.load %arg1[%c0, %c0_0] : memref<16x128xf32, #tpu.memory_space<vmem>>, vector<16x128xf32>
    %c0_1 = arith.constant 0 : index
    %c0_2 = arith.constant 0 : index
    %1 = vector.load %arg2[%c0_1, %c0_2] : memref<16x16xf32, #tpu.memory_space<vmem>>, vector<16x16xf32>
    %cst = arith.constant dense<0.000000e+00> : vector<16x128xf32>
    %2 = tpu.matmul %1, %0, %cst {dimension_numbers = #tpu.dot_dimension_numbers<[1], [0], [0], [1], [0, 0, 1, 1], [], []>, precision = #tpu.contract_precision<fp32>} : vector<16x16xf32>, vector<16x128xf32>, vector<16x128xf32> -> vector<16x128xf32>
    %c0_3 = arith.constant 0 : index
    %c0_4 = arith.constant 0 : index
    %3 = vector.load %arg3[%c0_3, %c0_4] : memref<16x1xf32, #tpu.memory_space<vmem>>, vector<16x1xf32>
    %4 = vector.broadcast %3 : vector<16x1xf32> to vector<16x128xf32>
    %5 = arith.addf %2, %4 : vector<16x128xf32>
    %cst_5 = arith.constant 0.000000e+00 : f32
    %6 = vector.broadcast %cst_5 : f32 to vector<16x128xf32>
    %7 = arith.maximumf %5, %6 : vector<16x128xf32>
    %c0_6 = arith.constant 0 : index
    %c0_7 = arith.constant 0 : index
    %8 = vector.load %arg4[%c0_6, %c0_7] : memref<16x16xf32, #tpu.memory_space<vmem>>, vector<16x16xf32>
    %cst_8 = arith.constant dense<0.000000e+00> : vector<16x128xf32>
    %9 = tpu.matmul %8, %7, %cst_8 {dimension_numbers = #tpu.dot_dimension_numbers<[1], [0], [0], [1], [0, 0, 1, 1], [], []>, precision = #tpu.contract_precision<fp32>} : vector<16x16xf32>, vector<16x128xf32>, vector<16x128xf32> -> vector<16x128xf32>
    %c0_9 = arith.constant 0 : index
    %c0_10 = arith.constant 0 : index
    %10 = vector.load %arg5[%c0_9, %c0_10] : memref<16x1xf32, #tpu.memory_space<vmem>>, vector<16x1xf32>
    %11 = vector.broadcast %10 : vector<16x1xf32> to vector<16x128xf32>
    %12 = arith.addf %9, %11 : vector<16x128xf32>
    %c0_11 = arith.constant 0 : index
    %c0_12 = arith.constant 0 : index
    %13 = vector.load %arg6[%c0_11, %c0_12] : memref<16x128xf32, #tpu.memory_space<vmem>>, vector<16x128xf32>
    tpu.vector_store %arg6[%c0_11, %c0_12], %12 {strides = array<i32>} : memref<16x128xf32, #tpu.memory_space<vmem>>, vector<16x128xf32>,
    return
  }
  func.func @transform_0(%arg0: i32) -> (i32, i32) {
    %c0_i32 = arith.constant 0 : i32
    %c0_i32_0 = arith.constant 0 : i32
    return %c0_i32, %arg0 : i32, i32
  }
  func.func @transform_1(%arg0: i32) -> (i32, i32) {
    %c0_i32 = arith.constant 0 : i32
    %c0_i32_0 = arith.constant 0 : i32
    %c0_i32_1 = arith.constant 0 : i32
    return %c0_i32, %c0_i32_0 : i32, i32
  }
  func.func @transform_2(%arg0: i32) -> (i32, i32) {
    %c0_i32 = arith.constant 0 : i32
    %c0_i32_0 = arith.constant 0 : i32
    %c0_i32_1 = arith.constant 0 : i32
    return %c0_i32, %c0_i32_0 : i32, i32
  }
  func.func @transform_3(%arg0: i32) -> (i32, i32) {
    %c0_i32 = arith.constant 0 : i32
    %c0_i32_0 = arith.constant 0 : i32
    %c0_i32_1 = arith.constant 0 : i32
    return %c0_i32, %c0_i32_0 : i32, i32
  }
  func.func @transform_4(%arg0: i32) -> (i32, i32) {
    %c0_i32 = arith.constant 0 : i32
    %c0_i32_0 = arith.constant 0 : i32
    %c0_i32_1 = arith.constant 0 : i32
    return %c0_i32, %c0_i32_0 : i32, i32
  }
  func.func @transform_5(%arg0: i32) -> (i32, i32) {
    %c0_i32 = arith.constant 0 : i32
    %c0_i32_0 = arith.constant 0 : i32
    return %c0_i32, %arg0 : i32, i32
  }
}

</mosaic_0001>

<llo_original>
// kernel: tpu_custom_call.1
$region0: #{tpu_custom_call.1}
  #allocation0 [shape = 'u32[]', space=smem, size = 0x4, offset = 0x4, fixed_abs, tag = 'smem constant byte address 0x4 - core index']
  #allocation1 [shape = 'u32[72,128]{1,0:T(1,128)}', space=vmem, size = 0x9000, scoped, tag = 'internal scratch']
  %s0 = inlined_call_operand.vmem [shape: f32[16,128], index: 0, kind: input, shape index: {}]
  %s1 = inlined_call_operand.vmem [shape: f32[16,16], index: 1, kind: input, shape index: {}]
  %s2 = inlined_call_operand.vmem [shape: f32[16,1], index: 2, kind: input, shape index: {}]
  %s3 = inlined_call_operand.hbm [shape: f32[16,16], index: 3, kind: input, shape index: {}]
  %s4 = inlined_call_operand.vmem [shape: f32[16,1], index: 4, kind: input, shape index: {}]
  %s5 = inlined_call_operand.hbm [shape: f32[16,128], index: 5, kind: output, shape index: {}]
  %s6 = sld [smem:[#allocation0]]
  $region34: #{tpu_custom_call.1} parent=0
    _
  %s8 = ssub.s32 1, %s6
  %s9 = scalar_select 0, %s8, %s6
  $region1: #{tpu_custom_call.1} parent=0
    #allocation2 [shape = 'u8[8192]{0}', space=vmem, size = 0x2000, scoped, tag = 'input window, operand 3, single buffered']
    #allocation3 [shape = 's32[1]{0}', space=sflag, size = 0x4, scoped, tag = 'scoped memory for tpu_custom_call.1']
    #allocation4 [shape = 's32[1]{0}', space=sflag, size = 0x4, scoped, tag = 'scoped memory for tpu_custom_call.1']
    #allocation5 [shape = 'u8[8192]{0}', space=vmem, size = 0x2000, scoped, tag = 'output window, operand 0, single buffered']
    %10 = vsyncpa [#allocation3], 0
    %11 = vsyncpa [#allocation4], 0
    // Predicated region
    $region2: #{tpu_custom_call.1} parent=1 // pred_check
      _
    $region3: #{tpu_custom_call.1} parent=1 // pred_check_branch
      %13 = sbr.rel (0) target = $region5
    $region4: #{tpu_custom_call.1} parent=1 // pred_region
      _
    $region5: #{tpu_custom_call.1} parent=1 // pred_fallthru
      _
    // Predicated region
    $region6: #{tpu_custom_call.1} parent=1 // pred_check
      _
    $region7: #{tpu_custom_call.1} parent=1 // pred_check_branch
      %15 = sbr.rel (0) target = $region9
    $region8: #{tpu_custom_call.1} parent=1 // pred_region
      _
    $region9: #{tpu_custom_call.1} parent=1 // pred_fallthru
      _
    // Predicated region
    $region10: #{tpu_custom_call.1} parent=1 // pred_check
      _
    $region11: #{tpu_custom_call.1} parent=1 // pred_check_branch
      %17 = sbr.rel (0) target = $region13
    $region12: #{tpu_custom_call.1} parent=1 // pred_region
      _
    $region13: #{tpu_custom_call.1} parent=1 // pred_fallthru
      _
    // Predicated region
    $region14: #{tpu_custom_call.1} parent=1 // pred_check
      _
    $region15: #{tpu_custom_call.1} parent=1 // pred_check_branch
      %19 = sbr.rel (0) target = $region17
    $region16: #{tpu_custom_call.1} parent=1 // pred_region
      %21 = vsyncadd [#allocation3], 0
      %s22 = sshll.u32 %s3, 4
      %s23 = int_to_ptr.hbm [resolvable:$true] %s22
      %s24 = sshll.u32 [#allocation2], 4
      %s25 = int_to_ptr.vmem [resolvable:$true] %s24
      %30 = dma.hbm_to_vmem [thread:$0]  %s23, 256, %s25, [#allocation3], 128, 128, 8
    $region17: #{tpu_custom_call.1} parent=1 // pred_fallthru
      _
    // Predicated region
    $region18: #{tpu_custom_call.1} parent=1 // pred_check
      _
    $region19: #{tpu_custom_call.1} parent=1 // pred_check_branch
      %32 = sbr.rel (0) target = $region21
    $region20: #{tpu_custom_call.1} parent=1 // pred_region
      _
    $region21: #{tpu_custom_call.1} parent=1 // pred_fallthru
      _
    // Predicated region
    $region22: #{tpu_custom_call.1} parent=1 // pred_check
      _
    $region23: #{tpu_custom_call.1} parent=1 // pred_check_branch
      %34 = sbr.rel (0) target = $region25
    $region24: #{tpu_custom_call.1} parent=1 // pred_region
      %36 = dma.done [#allocation3], 256
    $region25: #{tpu_custom_call.1} parent=1 // pred_fallthru
      _
    %v37 = vld [vmem:[%s0] sm:$0xff]
    %v38 = vld [vmem:[%s0 + $0x8] sm:$0xff]
    %v39 = vld [vmem:[%s1] sm:$0xff]
    %v40 = vld [vmem:[%s1 + $0x8] sm:$0xff]
    %v41 = vld [vmem:[%s2] sm:$0xff]
    %v42 = vld [vmem:[%s2 + $0x8] sm:$0xff]
    %44 = vset.pattern.permute.xlu0 0
    %45 = vperm.xlu0 %44, %v41
    %v46 = vpop.permute.xlu0 %45
    %49 = vset.pattern.permute.xlu0 0
    %50 = vperm.xlu0 %49, %v42
    %v51 = vpop.permute.xlu0 %50
    %vm53 = vcmask 130048
    %v55 = vsel %vm53, %v39, 0
    %v58 = vsel %vm53, %v40, 0
    %60 = vmatpush.msra.mxu0 0.0
    %61 = vmatpush.msra.mxu0 0.0
    %62 = vmatpush.msra.mxu0 0.0
    %63 = vmatpush.msra.mxu0 0.0
    %64 = vmatpush.msra.mxu0 0.0
    %65 = vmatpush.msra.mxu0 0.0
    %66 = vmatpush.msra.mxu0 0.0
    %67 = vmatpush.msra.mxu0 0.0
    %68 = vmatpush.msra.mxu0 0.0
    %69 = vmatpush.msra.mxu0 0.0
    %70 = vmatpush.msra.mxu0 0.0
    %71 = vmatpush.msra.mxu0 0.0
    %72 = vmatpush.msra.mxu0 0.0
    %73 = vmatpush.msra.mxu0 0.0
    %v74 = vand.u32 %v38, 4294901760
    %75 = vmatpush.msra.mxu0 %v74
    %v76 = vand.u32 %v37, 4294901760
    %77 = vmatpush.msra.mxu0 %v76
    %v78 = vand.u32 %v55, 4294901760
    %v79 = vsub.f32 %v55, %v78
    %v80 = vand.u32 %v79, 4294901760
    %v81 = vsub.f32 %v79, %v80
    %v82 = vand.u32 %v81, 4294901760
    %83 = vmatmul.f32.gmra.mxu0 %v82
    %v84 = vpop.f32.mrf.mxu0
    %v85 = vadd.f32 %v46, %v84
    %v86 = vand.u32 %v58, 4294901760
    %v87 = vsub.f32 %v58, %v86
    %v88 = vand.u32 %v87, 4294901760
    %v89 = vsub.f32 %v87, %v88
    %v90 = vand.u32 %v89, 4294901760
    %91 = vmatmul.f32.gmra.mxu0 %v90
    %v92 = vpop.f32.mrf.mxu0
    %v93 = vadd.f32 %v51, %v92
    %94 = vdwg.mxu0
    %95 = vmatpush.msra.mxu0 0.0
    %96 = vmatpush.msra.mxu0 0.0
    %97 = vmatpush.msra.mxu0 0.0
    %98 = vmatpush.msra.mxu0 0.0
    %99 = vmatpush.msra.mxu0 0.0
    %100 = vmatpush.msra.mxu0 0.0
    %101 = vmatpush.msra.mxu0 0.0
    %102 = vmatpush.msra.mxu0 0.0
    %103 = vmatpush.msra.mxu0 0.0
    %104 = vmatpush.msra.mxu0 0.0
    %105 = vmatpush.msra.mxu0 0.0
    %106 = vmatpush.msra.mxu0 0.0
    %107 = vmatpush.msra.mxu0 0.0
    %108 = vmatpush.msra.mxu0 0.0
    %v109 = vand.u32 %v38, 4294901760
    %v110 = vsub.f32 %v38, %v109
    %v111 = vand.u32 %v110, 4294901760
    %v112 = vsub.f32 %v110, %v111
    %v113 = vand.u32 %v112, 4294901760
    %114 = vmatpush.msra.mxu0 %v113
    %v115 = vand.u32 %v37, 4294901760
    %v116 = vsub.f32 %v37, %v115
    %v117 = vand.u32 %v116, 4294901760
    %v118 = vsub.f32 %v116, %v117
    %v119 = vand.u32 %v118, 4294901760
    %120 = vmatpush.msra.mxu0 %v119
    %v121 = vand.u32 %v55, 4294901760
    %122 = vmatmul.f32.gmra.mxu0 %v121
    %v123 = vpop.f32.mrf.mxu0
    %v124 = vadd.f32 %v85, %v123
    %v125 = vand.u32 %v58, 4294901760
    %126 = vmatmul.f32.gmra.mxu0 %v125
    %v127 = vpop.f32.mrf.mxu0
    %v128 = vadd.f32 %v93, %v127
    %129 = vdwg.mxu0
    %130 = vmatpush.msra.mxu0 0.0
    %131 = vmatpush.msra.mxu0 0.0
    %132 = vmatpush.msra.mxu0 0.0
    %133 = vmatpush.msra.mxu0 0.0
    %134 = vmatpush.msra.mxu0 0.0
    %135 = vmatpush.msra.mxu0 0.0
    %136 = vmatpush.msra.mxu0 0.0
    %137 = vmatpush.msra.mxu0 0.0
    %138 = vmatpush.msra.mxu0 0.0
    %139 = vmatpush.msra.mxu0 0.0
    %140 = vmatpush.msra.mxu0 0.0
    %141 = vmatpush.msra.mxu0 0.0
    %142 = vmatpush.msra.mxu0 0.0
    %143 = vmatpush.msra.mxu0 0.0
    %v144 = vand.u32 %v38, 4294901760
    %v145 = vsub.f32 %v38, %v144
    %146 = vmatpush.msra.mxu0 %v145
    %v147 = vand.u32 %v37, 4294901760
    %v148 = vsub.f32 %v37, %v147
    %149 = vmatpush.msra.mxu0 %v148
    %v150 = vand.u32 %v55, 4294901760
    %v151 = vsub.f32 %v55, %v150
    %152 = vmatmul.f32.gmra.mxu0 %v151
    %v153 = vpop.f32.mrf.mxu0
    %v154 = vadd.f32 %v124, %v153
    %v155 = vand.u32 %v58, 4294901760
    %v156 = vsub.f32 %v58, %v155
    %157 = vmatmul.f32.gmra.mxu0 %v156
    %v158 = vpop.f32.mrf.mxu0
    %v159 = vadd.f32 %v128, %v158
    %160 = vdwg.mxu0
    %161 = vmatpush.msra.mxu0 0.0
    %162 = vmatpush.msra.mxu0 0.0
    %163 = vmatpush.msra.mxu0 0.0
    %164 = vmatpush.msra.mxu0 0.0
    %165 = vmatpush.msra.mxu0 0.0
    %166 = vmatpush.msra.mxu0 0.0
    %167 = vmatpush.msra.mxu0 0.0
    %168 = vmatpush.msra.mxu0 0.0
    %169 = vmatpush.msra.mxu0 0.0
    %170 = vmatpush.msra.mxu0 0.0
    %171 = vmatpush.msra.mxu0 0.0
    %172 = vmatpush.msra.mxu0 0.0
    %173 = vmatpush.msra.mxu0 0.0
    %174 = vmatpush.msra.mxu0 0.0
    %v175 = vand.u32 %v38, 4294901760
    %176 = vmatpush.msra.mxu0 %v175
    %v177 = vand.u32 %v37, 4294901760
    %178 = vmatpush.msra.mxu0 %v177
    %v179 = vand.u32 %v55, 4294901760
    %v180 = vsub.f32 %v55, %v179
    %v181 = vand.u32 %v180, 4294901760
    %182 = vmatmul.f32.gmra.mxu0 %v181
    %v183 = vpop.f32.mrf.mxu0
    %v184 = vadd.f32 %v154, %v183
    %v185 = vand.u32 %v58, 4294901760
    %v186 = vsub.f32 %v58, %v185
    %v187 = vand.u32 %v186, 4294901760
    %188 = vmatmul.f32.gmra.mxu0 %v187
    %v189 = vpop.f32.mrf.mxu0
    %v190 = vadd.f32 %v159, %v189
    %191 = vdwg.mxu0
    %192 = vmatpush.msra.mxu0 0.0
    %193 = vmatpush.msra.mxu0 0.0
    %194 = vmatpush.msra.mxu0 0.0
    %195 = vmatpush.msra.mxu0 0.0
    %196 = vmatpush.msra.mxu0 0.0
    %197 = vmatpush.msra.mxu0 0.0
    %198 = vmatpush.msra.mxu0 0.0
    %199 = vmatpush.msra.mxu0 0.0
    %200 = vmatpush.msra.mxu0 0.0
    %201 = vmatpush.msra.mxu0 0.0
    %202 = vmatpush.msra.mxu0 0.0
    %203 = vmatpush.msra.mxu0 0.0
    %204 = vmatpush.msra.mxu0 0.0
    %205 = vmatpush.msra.mxu0 0.0
    %v206 = vand.u32 %v38, 4294901760
    %v207 = vsub.f32 %v38, %v206
    %v208 = vand.u32 %v207, 4294901760
    %209 = vmatpush.msra.mxu0 %v208
    %v210 = vand.u32 %v37, 4294901760
    %v211 = vsub.f32 %v37, %v210
    %v212 = vand.u32 %v211, 4294901760
    %213 = vmatpush.msra.mxu0 %v212
    %v214 = vand.u32 %v55, 4294901760
    %215 = vmatmul.f32.gmra.mxu0 %v214
    %v216 = vpop.f32.mrf.mxu0
    %v217 = vadd.f32 %v184, %v216
    %v218 = vand.u32 %v58, 4294901760
    %219 = vmatmul.f32.gmra.mxu0 %v218
    %v220 = vpop.f32.mrf.mxu0
    %v221 = vadd.f32 %v190, %v220
    %222 = vdwg.mxu0
    %223 = vmatpush.msra.mxu0 0.0
    %224 = vmatpush.msra.mxu0 0.0
    %225 = vmatpush.msra.mxu0 0.0
    %226 = vmatpush.msra.mxu0 0.0
    %227 = vmatpush.msra.mxu0 0.0
    %228 = vmatpush.msra.mxu0 0.0
    %229 = vmatpush.msra.mxu0 0.0
    %230 = vmatpush.msra.mxu0 0.0
    %231 = vmatpush.msra.mxu0 0.0
    %232 = vmatpush.msra.mxu0 0.0
    %233 = vmatpush.msra.mxu0 0.0
    %234 = vmatpush.msra.mxu0 0.0
    %235 = vmatpush.msra.mxu0 0.0
    %236 = vmatpush.msra.mxu0 0.0
    %v237 = vand.u32 %v38, 4294901760
    %238 = vmatpush.msra.mxu0 %v237
    %v239 = vand.u32 %v37, 4294901760
    %240 = vmatpush.msra.mxu0 %v239
    %v241 = vand.u32 %v55, 4294901760
    %242 = vmatmul.f32.gmra.mxu0 %v241
    %v243 = vpop.f32.mrf.mxu0
    %v244 = vadd.f32 %v217, %v243
    %v245 = vand.u32 %v58, 4294901760
    %246 = vmatmul.f32.gmra.mxu0 %v245
    %v247 = vpop.f32.mrf.mxu0
    %v248 = vadd.f32 %v221, %v247
    %249 = vdwg.mxu0
    %v250 = vmax.f32 %v244, 0.0
    %v251 = vmax.f32 %v248, 0.0
    %v252 = vld [vmem:[#allocation2] sm:$0xff]
    %v253 = vld [vmem:[#allocation2 + $0x8] sm:$0xff]
    %v254 = vld [vmem:[%s4] sm:$0xff]
    %v255 = vld [vmem:[%s4 + $0x8] sm:$0xff]
    %257 = vset.pattern.permute.xlu0 0
    %258 = vperm.xlu0 %257, %v254
    %v259 = vpop.permute.xlu0 %258
    %262 = vset.pattern.permute.xlu0 0
    %263 = vperm.xlu0 %262, %v255
    %v264 = vpop.permute.xlu0 %263
    %v267 = vsel %vm53, %v252, 0
    %v270 = vsel %vm53, %v253, 0
    %272 = vmatpush.msra.mxu0 0.0
    %273 = vmatpush.msra.mxu0 0.0
    %274 = vmatpush.msra.mxu0 0.0
    %275 = vmatpush.msra.mxu0 0.0
    %276 = vmatpush.msra.mxu0 0.0
    %277 = vmatpush.msra.mxu0 0.0
    %278 = vmatpush.msra.mxu0 0.0
    %279 = vmatpush.msra.mxu0 0.0
    %280 = vmatpush.msra.mxu0 0.0
    %281 = vmatpush.msra.mxu0 0.0
    %282 = vmatpush.msra.mxu0 0.0
    %283 = vmatpush.msra.mxu0 0.0
    %284 = vmatpush.msra.mxu0 0.0
    %285 = vmatpush.msra.mxu0 0.0
    %v286 = vand.u32 %v251, 4294901760
    %287 = vmatpush.msra.mxu0 %v286
    %v288 = vand.u32 %v250, 4294901760
    %289 = vmatpush.msra.mxu0 %v288
    %v290 = vand.u32 %v267, 4294901760
    %v291 = vsub.f32 %v267, %v290
    %v292 = vand.u32 %v291, 4294901760
    %v293 = vsub.f32 %v291, %v292
    %v294 = vand.u32 %v293, 4294901760
    %295 = vmatmul.f32.gmra.mxu0 %v294
    %v296 = vpop.f32.mrf.mxu0
    %v297 = vadd.f32 %v259, %v296
    %v298 = vand.u32 %v270, 4294901760
    %v299 = vsub.f32 %v270, %v298
    %v300 = vand.u32 %v299, 4294901760
    %v301 = vsub.f32 %v299, %v300
    %v302 = vand.u32 %v301, 4294901760
    %303 = vmatmul.f32.gmra.mxu0 %v302
    %v304 = vpop.f32.mrf.mxu0
    %v305 = vadd.f32 %v264, %v304
    %306 = vdwg.mxu0
    %307 = vmatpush.msra.mxu0 0.0
    %308 = vmatpush.msra.mxu0 0.0
    %309 = vmatpush.msra.mxu0 0.0
    %310 = vmatpush.msra.mxu0 0.0
    %311 = vmatpush.msra.mxu0 0.0
    %312 = vmatpush.msra.mxu0 0.0
    %313 = vmatpush.msra.mxu0 0.0
    %314 = vmatpush.msra.mxu0 0.0
    %315 = vmatpush.msra.mxu0 0.0
    %316 = vmatpush.msra.mxu0 0.0
    %317 = vmatpush.msra.mxu0 0.0
    %318 = vmatpush.msra.mxu0 0.0
    %319 = vmatpush.msra.mxu0 0.0
    %320 = vmatpush.msra.mxu0 0.0
    %v321 = vand.u32 %v251, 4294901760
    %v322 = vsub.f32 %v251, %v321
    %v323 = vand.u32 %v322, 4294901760
    %v324 = vsub.f32 %v322, %v323
    %v325 = vand.u32 %v324, 4294901760
    %326 = vmatpush.msra.mxu0 %v325
    %v327 = vand.u32 %v250, 4294901760
    %v328 = vsub.f32 %v250, %v327
    %v329 = vand.u32 %v328, 4294901760
    %v330 = vsub.f32 %v328, %v329
    %v331 = vand.u32 %v330, 4294901760
    %332 = vmatpush.msra.mxu0 %v331
    %v333 = vand.u32 %v267, 4294901760
    %334 = vmatmul.f32.gmra.mxu0 %v333
    %v335 = vpop.f32.mrf.mxu0
    %v336 = vadd.f32 %v297, %v335
    %v337 = vand.u32 %v270, 4294901760
    %338 = vmatmul.f32.gmra.mxu0 %v337
    %v339 = vpop.f32.mrf.mxu0
    %v340 = vadd.f32 %v305, %v339
    %341 = vdwg.mxu0
    %342 = vmatpush.msra.mxu0 0.0
    %343 = vmatpush.msra.mxu0 0.0
    %344 = vmatpush.msra.mxu0 0.0
    %345 = vmatpush.msra.mxu0 0.0
    %346 = vmatpush.msra.mxu0 0.0
    %347 = vmatpush.msra.mxu0 0.0
    %348 = vmatpush.msra.mxu0 0.0
    %349 = vmatpush.msra.mxu0 0.0
    %350 = vmatpush.msra.mxu0 0.0
    %351 = vmatpush.msra.mxu0 0.0
    %352 = vmatpush.msra.mxu0 0.0
    %353 = vmatpush.msra.mxu0 0.0
    %354 = vmatpush.msra.mxu0 0.0
    %355 = vmatpush.msra.mxu0 0.0
    %v356 = vand.u32 %v251, 4294901760
    %v357 = vsub.f32 %v251, %v356
    %358 = vmatpush.msra.mxu0 %v357
    %v359 = vand.u32 %v250, 4294901760
    %v360 = vsub.f32 %v250, %v359
    %361 = vmatpush.msra.mxu0 %v360
    %v362 = vand.u32 %v267, 4294901760
    %v363 = vsub.f32 %v267, %v362
    %364 = vmatmul.f32.gmra.mxu0 %v363
    %v365 = vpop.f32.mrf.mxu0
    %v366 = vadd.f32 %v336, %v365
    %v367 = vand.u32 %v270, 4294901760
    %v368 = vsub.f32 %v270, %v367
    %369 = vmatmul.f32.gmra.mxu0 %v368
    %v370 = vpop.f32.mrf.mxu0
    %v371 = vadd.f32 %v340, %v370
    %372 = vdwg.mxu0
    %373 = vmatpush.msra.mxu0 0.0
    %374 = vmatpush.msra.mxu0 0.0
    %375 = vmatpush.msra.mxu0 0.0
    %376 = vmatpush.msra.mxu0 0.0
    %377 = vmatpush.msra.mxu0 0.0
    %378 = vmatpush.msra.mxu0 0.0
    %379 = vmatpush.msra.mxu0 0.0
    %380 = vmatpush.msra.mxu0 0.0
    %381 = vmatpush.msra.mxu0 0.0
    %382 = vmatpush.msra.mxu0 0.0
    %383 = vmatpush.msra.mxu0 0.0
    %384 = vmatpush.msra.mxu0 0.0
    %385 = vmatpush.msra.mxu0 0.0
    %386 = vmatpush.msra.mxu0 0.0
    %v387 = vand.u32 %v251, 4294901760
    %388 = vmatpush.msra.mxu0 %v387
    %v389 = vand.u32 %v250, 4294901760
    %390 = vmatpush.msra.mxu0 %v389
    %v391 = vand.u32 %v267, 4294901760
    %v392 = vsub.f32 %v267, %v391
    %v393 = vand.u32 %v392, 4294901760
    %394 = vmatmul.f32.gmra.mxu0 %v393
    %v395 = vpop.f32.mrf.mxu0
    %v396 = vadd.f32 %v366, %v395
    %v397 = vand.u32 %v270, 4294901760
    %v398 = vsub.f32 %v270, %v397
    %v399 = vand.u32 %v398, 4294901760
    %400 = vmatmul.f32.gmra.mxu0 %v399
    %v401 = vpop.f32.mrf.mxu0
    %v402 = vadd.f32 %v371, %v401
    %403 = vdwg.mxu0
    %404 = vmatpush.msra.mxu0 0.0
    %405 = vmatpush.msra.mxu0 0.0
    %406 = vmatpush.msra.mxu0 0.0
    %407 = vmatpush.msra.mxu0 0.0
    %408 = vmatpush.msra.mxu0 0.0
    %409 = vmatpush.msra.mxu0 0.0
    %410 = vmatpush.msra.mxu0 0.0
    %411 = vmatpush.msra.mxu0 0.0
    %412 = vmatpush.msra.mxu0 0.0
    %413 = vmatpush.msra.mxu0 0.0
    %414 = vmatpush.msra.mxu0 0.0
    %415 = vmatpush.msra.mxu0 0.0
    %416 = vmatpush.msra.mxu0 0.0
    %417 = vmatpush.msra.mxu0 0.0
    %v418 = vand.u32 %v251, 4294901760
    %v419 = vsub.f32 %v251, %v418
    %v420 = vand.u32 %v419, 4294901760
    %421 = vmatpush.msra.mxu0 %v420
    %v422 = vand.u32 %v250, 4294901760
    %v423 = vsub.f32 %v250, %v422
    %v424 = vand.u32 %v423, 4294901760
    %425 = vmatpush.msra.mxu0 %v424
    %v426 = vand.u32 %v267, 4294901760
    %427 = vmatmul.f32.gmra.mxu0 %v426
    %v428 = vpop.f32.mrf.mxu0
    %v429 = vadd.f32 %v396, %v428
    %v430 = vand.u32 %v270, 4294901760
    %431 = vmatmul.f32.gmra.mxu0 %v430
    %v432 = vpop.f32.mrf.mxu0
    %v433 = vadd.f32 %v402, %v432
    %434 = vdwg.mxu0
    %435 = vmatpush.msra.mxu0 0.0
    %436 = vmatpush.msra.mxu0 0.0
    %437 = vmatpush.msra.mxu0 0.0
    %438 = vmatpush.msra.mxu0 0.0
    %439 = vmatpush.msra.mxu0 0.0
    %440 = vmatpush.msra.mxu0 0.0
    %441 = vmatpush.msra.mxu0 0.0
    %442 = vmatpush.msra.mxu0 0.0
    %443 = vmatpush.msra.mxu0 0.0
    %444 = vmatpush.msra.mxu0 0.0
    %445 = vmatpush.msra.mxu0 0.0
    %446 = vmatpush.msra.mxu0 0.0
    %447 = vmatpush.msra.mxu0 0.0
    %448 = vmatpush.msra.mxu0 0.0
    %v449 = vand.u32 %v251, 4294901760
    %450 = vmatpush.msra.mxu0 %v449
    %v451 = vand.u32 %v250, 4294901760
    %452 = vmatpush.msra.mxu0 %v451
    %v453 = vand.u32 %v267, 4294901760
    %454 = vmatmul.f32.gmra.mxu0 %v453
    %v455 = vpop.f32.mrf.mxu0
    %v456 = vadd.f32 %v429, %v455
    %v457 = vand.u32 %v270, 4294901760
    %458 = vmatmul.f32.gmra.mxu0 %v457
    %v459 = vpop.f32.mrf.mxu0
    %v460 = vadd.f32 %v433, %v459
    %461 = vdwg.mxu0
    %462 = vst [vmem:[#allocation5] sm:$0xff] %v456
    %463 = vst [vmem:[#allocation5 + $0x8] sm:$0xff] %v460
    // Predicated region
    $region26: #{tpu_custom_call.1} parent=1 // pred_check
      _
    $region27: #{tpu_custom_call.1} parent=1 // pred_check_branch
      %465 = sbr.rel (0) target = $region29
    $region28: #{tpu_custom_call.1} parent=1 // pred_region
      %467 = vsyncadd [#allocation4], 0
      %s468 = sshll.u32 [#allocation5], 4
      %s469 = int_to_ptr.vmem [resolvable:$true] %s468
      %s470 = sshll.u32 %s5, 4
      %s471 = int_to_ptr.hbm [resolvable:$true] %s470
      %476 = dma.vmem_to_hbm [thread:$0]  %s469, 256, %s471, [#allocation4], 128, 128, 8
    $region29: #{tpu_custom_call.1} parent=1 // pred_fallthru
      _
    // Predicated region
    $region30: #{tpu_custom_call.1} parent=1 // pred_check
      _
    $region31: #{tpu_custom_call.1} parent=1 // pred_check_branch
      %478 = sbr.rel (0) target = $region33
    $region32: #{tpu_custom_call.1} parent=1 // pred_region
      %480 = dma.done [#allocation4], 256
    $region33: #{tpu_custom_call.1} parent=1 // pred_fallthru
      _
    %481 = vsyncpa [#allocation3], 1
    %482 = vsyncpa [#allocation4], 1

</llo_original>
